<compile_context>
chip_gen: v5e
topology: v5e:2x2
jax: 0.10.0
libtpu: 0.0.40
codegen_flags: <defaults>
</compile_context>

<pallas_src>
import jax
import jax.numpy as jnp
from jax.experimental import pallas as pl
from jax.experimental.pallas import tpu as pltpu


def _round_up(v, m):
    return ((v + m - 1) // m) * m


def _gdl_reduce_kernel(x_ref, y_ref, out_ref):
    """Accumulate per-(b, c) spatial reductions: tp, sum_x, vol.

    x_ref:   (C, tile_hw) network output tile (any float dtype)
    y_ref:   (1, tile_hw) int32 label row (value == C in padded region)
    out_ref: (C, 3) f32 resident accumulator: [:, 0]=tp, [:, 1]=sum_x, [:, 2]=vol
    """
    k = pl.program_id(1)

    @pl.when(k == 0)
    def _():
        out_ref[...] = jnp.zeros_like(out_ref)

    x = x_ref[...].astype(jnp.float32)                       # (C, tile_hw)
    labels = y_ref[...]                                      # (1, tile_hw)
    c_ids = jax.lax.broadcasted_iota(jnp.int32, x.shape, 0)  # channel ids
    y_onehot = (labels == c_ids).astype(jnp.float32)         # fused one-hot

    out_ref[:, 0:1] += jnp.sum(x * y_onehot, axis=-1, keepdims=True)  # tp
    out_ref[:, 1:2] += jnp.sum(x, axis=-1, keepdims=True)             # sum_x
    out_ref[:, 2:3] += jnp.sum(y_onehot, axis=-1, keepdims=True)      # vol


def gdl_loss(x, y, smooth=1.0):
    """GDL.forward(x, y) with default constructor args.

    x: (B, C, *spatial) float network output (f32 or bf16)
    y: (B, 1, *spatial) or (B, *spatial) integer label map
    """
    B, C = x.shape[0], x.shape[1]
    HW = 1
    for s in x.shape[2:]:
        HW *= s

    # Label map -> (B, 1, HW) int32 (mirrors the torch view/scatter_ path).
    if y.ndim == x.ndim - 1:
        y = y.reshape((B, 1) + y.shape[1:])
    yl = y.reshape(B, 1, HW).astype(jnp.int32)
    xf = x.reshape(B, C, HW)

    # --- spatial tile selection -------------------------------------------
    LANE = 128
    itemsize_x = jnp.dtype(x.dtype).itemsize
    bytes_per_lane_col = C * itemsize_x + 4          # x column + int32 label
    budget = 4 * 1024 * 1024                         # per-buffer; x2 for dbl-buf
    max_tile = (budget // bytes_per_lane_col) // LANE * LANE
    max_tile = max(LANE, min(32768, max_tile))

    if HW <= max_tile:
        tile_hw = _round_up(HW, LANE)
        hw_pad = tile_hw
    else:
        tile_hw = max_tile
        hw_pad = _round_up(HW, tile_hw)

    if hw_pad != HW:
        # zero-pad x (neutral for all sums); pad labels with C so no channel
        # matches in the padded region (one-hot contributes nothing).
        xf = jnp.pad(xf, ((0, 0), (0, 0), (0, hw_pad - HW)))
        yl = jnp.pad(yl, ((0, 0), (0, 0), (0, hw_pad - HW)), constant_values=C)

    num_k = hw_pad // tile_hw

    out = pl.pallas_call(
        _gdl_reduce_kernel,
        grid=(B, num_k),
        in_specs=[
            pl.BlockSpec((None, C, tile_hw), lambda b, k: (b, 0, k)),
            pl.BlockSpec((None, 1, tile_hw), lambda b, k: (b, 0, k)),
        ],
        out_specs=pl.BlockSpec((None, C, 3), lambda b, k: (b, 0, 0)),
        out_shape=jax.ShapeDtypeStruct((B, C, 3), jnp.float32),
        compiler_params=pltpu.CompilerParams(
            dimension_semantics=("parallel", "arbitrary")
        ),
    )(xf, yl)

    # --- tiny (B, C) post-processing glue ---------------------------------
    tp = out[:, :, 0]
    sum_x = out[:, :, 1]
    vol = out[:, :, 2]
    fp = sum_x - tp          # sum(x*(1-y)) == sum(x) - sum(x*y)
    fn = vol - tp            # sum((1-x)*y) == sum(y) - sum(x*y)

    volumes = vol + 1e-6     # square_volumes=False
    tp = tp / volumes
    fp = fp / volumes
    fn = fn / volumes

    # batch_dice=False -> reduce over the channel axis
    tp = tp.sum(axis=1)
    fp = fp.sum(axis=1)
    fn = fn.sum(axis=1)

    dc = (2.0 * tp + smooth) / (2.0 * tp + fp + fn + smooth)
    return -dc.mean()
    # TODO(synk): apply_nonlin / loss_mask / batch_dice / do_bg=False variants
    # of the torch module are non-default options and are not fused here.


def _gdl_loss_reference(x, y, smooth=1.0):
    """Pure-JAX reference mirroring the PyTorch forward (default args)."""
    B, C = x.shape[0], x.shape[1]
    if y.ndim == x.ndim - 1:
        y = y.reshape((B, 1) + y.shape[1:])
    y_onehot = (
        y == jnp.arange(C, dtype=y.dtype).reshape((1, C) + (1,) * (x.ndim - 2))
    ).astype(jnp.float32)
    xf = x.astype(jnp.float32)
    axes = tuple(range(2, x.ndim))
    tp = jnp.sum(xf * y_onehot, axis=axes)
    fp = jnp.sum(xf * (1.0 - y_onehot), axis=axes)
    fn = jnp.sum((1.0 - xf) * y_onehot, axis=axes)
    volumes = jnp.sum(y_onehot, axis=axes) + 1e-6
    tp, fp, fn = tp / volumes, fp / volumes, fn / volumes
    tp, fp, fn = tp.sum(axis=1), fp.sum(axis=1), fn.sum(axis=1)
    dc = (2.0 * tp + smooth) / (2.0 * tp + fp + fn + smooth)
    return -dc.mean()


if __name__ == "__main__":
    key = jax.random.PRNGKey(0)
    kx, ky = jax.random.split(key)

    B, C, H, W = 2, 4, 16, 16
    # net output (apply_nonlin=None -> consumed as-is)
    x = jax.random.uniform(kx, (B, C, H, W), dtype=jnp.float32)
    # label map (b, 1, h, w) with class ids in [0, C)
    y = jax.random.randint(ky, (B, 1, H, W), 0, C, dtype=jnp.int32)

    loss = jax.block_until_ready(gdl_loss(x, y))
    ref = jax.block_until_ready(_gdl_loss_reference(x, y))
    assert jnp.allclose(loss, ref, rtol=1e-5, atol=1e-5), (loss, ref)

    print("KERNEL_OK")
</pallas_src>

<mosaic_0001>
module attributes {stable_mosaic.version = 11 : i64} {
  func.func @_gdl_reduce_kernel(%arg0: i32, %arg1: i32, %arg2: memref<1x4x256xf32, #tpu.memory_space<vmem>>, %arg3: memref<1x1x256xi32, #tpu.memory_space<vmem>>, %arg4: memref<1x4x3xf32, #tpu.memory_space<vmem>>) attributes {dimension_semantics = [#tpu.dimension_semantics<parallel>, #tpu.dimension_semantics<arbitrary>], iteration_bounds = array<i64: 2, 1>, scalar_prefetch = 0 : i64, scratch_operands = 0 : i64, tpu.core_type = #tpu.core_type<tc>, window_params = [{transform_indices = @transform_0, window_bounds = array<i64: 1, 4, 256>}, {transform_indices = @transform_1, window_bounds = array<i64: 1, 1, 256>}, {transform_indices = @transform_2, window_bounds = array<i64: 1, 4, 3>}]} {
    %c0_i32 = arith.constant 0 : i32
    %0 = arith.cmpi eq, %arg1, %c0_i32 : i32
    %1 = arith.extui %0 : i1 to i32
    %c0_i32_0 = arith.constant 0 : i32
    %2 = arith.cmpi ne, %1, %c0_i32_0 : i32
    scf.if %2 {
      %cst_24 = arith.constant 0.000000e+00 : f32
      %37 = vector.broadcast %cst_24 : f32 to vector<4x3xf32>
      %c0_25 = arith.constant 0 : index
      %c0_26 = arith.constant 0 : index
      %c0_27 = arith.constant 0 : index
      %38 = vector.load %arg4[%c0_25, %c0_26, %c0_27] : memref<1x4x3xf32, #tpu.memory_space<vmem>>, vector<1x4x3xf32>
      %39 = vector.shape_cast %38 : vector<1x4x3xf32> to vector<4x3xf32>
      %40 = vector.shape_cast %37 : vector<4x3xf32> to vector<1x4x3xf32>
      tpu.vector_store %arg4[%c0_25, %c0_26, %c0_27], %40 {strides = array<i32>} : memref<1x4x3xf32, #tpu.memory_space<vmem>>, vector<1x4x3xf32>,
    } else {
    }
    %c0 = arith.constant 0 : index
    %c0_1 = arith.constant 0 : index
    %c0_2 = arith.constant 0 : index
    %3 = vector.load %arg2[%c0, %c0_1, %c0_2] : memref<1x4x256xf32, #tpu.memory_space<vmem>>, vector<1x4x256xf32>
    %4 = vector.shape_cast %3 : vector<1x4x256xf32> to vector<4x256xf32>
    %c0_3 = arith.constant 0 : index
    %c0_4 = arith.constant 0 : index
    %c0_5 = arith.constant 0 : index
    %5 = vector.load %arg3[%c0_3, %c0_4, %c0_5] : memref<1x1x256xi32, #tpu.memory_space<vmem>>, vector<1x1x256xi32>
    %6 = vector.shape_cast %5 : vector<1x1x256xi32> to vector<1x256xi32>
    %7 = tpu.iota {dimensions = array<i32: 0>} : vector<4x256xi32>
    %8 = vector.broadcast %6 : vector<1x256xi32> to vector<4x256xi32>
    %9 = arith.cmpi eq, %8, %7 : vector<4x256xi32>
    %10 = arith.extui %9 : vector<4x256xi1> to vector<4x256xi32>
    %11 = arith.sitofp %10 : vector<4x256xi32> to vector<4x256xf32>
    %c0_6 = arith.constant 0 : index
    %c0_7 = arith.constant 0 : index
    %c0_8 = arith.constant 0 : index
    %12 = vector.load %arg4[%c0_6, %c0_7, %c0_8] : memref<1x4x3xf32, #tpu.memory_space<vmem>>, vector<1x4x1xf32>
    %13 = vector.shape_cast %12 : vector<1x4x1xf32> to vector<4x1xf32>
    %14 = arith.mulf %4, %11 : vector<4x256xf32>
    %cst = arith.constant dense<0.000000e+00> : vector<4xf32>
    %15 = vector.multi_reduction <add>, %14, %cst [1] : vector<4x256xf32> to vector<4xf32>
    %16 = vector.shape_cast %15 : vector<4xf32> to vector<4x1xf32>
    %17 = arith.addf %13, %16 : vector<4x1xf32>
    %c0_9 = arith.constant 0 : index
    %c0_10 = arith.constant 0 : index
    %c0_11 = arith.constant 0 : index
    %18 = vector.load %arg4[%c0_9, %c0_10, %c0_11] : memref<1x4x3xf32, #tpu.memory_space<vmem>>, vector<1x4x1xf32>
    %19 = vector.shape_cast %18 : vector<1x4x1xf32> to vector<4x1xf32>
    %20 = vector.shape_cast %17 : vector<4x1xf32> to vector<1x4x1xf32>
    tpu.vector_store %arg4[%c0_9, %c0_10, %c0_11], %20 {strides = array<i32>} : memref<1x4x3xf32, #tpu.memory_space<vmem>>, vector<1x4x1xf32>,
    %c0_12 = arith.constant 0 : index
    %c0_13 = arith.constant 0 : index
    %c1 = arith.constant 1 : index
    %21 = vector.load %arg4[%c0_12, %c0_13, %c1] : memref<1x4x3xf32, #tpu.memory_space<vmem>>, vector<1x4x1xf32>
    %22 = vector.shape_cast %21 : vector<1x4x1xf32> to vector<4x1xf32>
    %cst_14 = arith.constant dense<0.000000e+00> : vector<4xf32>
    %23 = vector.multi_reduction <add>, %4, %cst_14 [1] : vector<4x256xf32> to vector<4xf32>
    %24 = vector.shape_cast %23 : vector<4xf32> to vector<4x1xf32>
    %25 = arith.addf %22, %24 : vector<4x1xf32>
    %c0_15 = arith.constant 0 : index
    %c0_16 = arith.constant 0 : index
    %c1_17 = arith.constant 1 : index
    %26 = vector.load %arg4[%c0_15, %c0_16, %c1_17] : memref<1x4x3xf32, #tpu.memory_space<vmem>>, vector<1x4x1xf32>
    %27 = vector.shape_cast %26 : vector<1x4x1xf32> to vector<4x1xf32>
    %28 = vector.shape_cast %25 : vector<4x1xf32> to vector<1x4x1xf32>
    tpu.vector_store %arg4[%c0_15, %c0_16, %c1_17], %28 {strides = array<i32>} : memref<1x4x3xf32, #tpu.memory_space<vmem>>, vector<1x4x1xf32>,
    %c0_18 = arith.constant 0 : index
    %c0_19 = arith.constant 0 : index
    %c2 = arith.constant 2 : index
    %29 = vector.load %arg4[%c0_18, %c0_19, %c2] : memref<1x4x3xf32, #tpu.memory_space<vmem>>, vector<1x4x1xf32>
    %30 = vector.shape_cast %29 : vector<1x4x1xf32> to vector<4x1xf32>
    %cst_20 = arith.constant dense<0.000000e+00> : vector<4xf32>
    %31 = vector.multi_reduction <add>, %11, %cst_20 [1] : vector<4x256xf32> to vector<4xf32>
    %32 = vector.shape_cast %31 : vector<4xf32> to vector<4x1xf32>
    %33 = arith.addf %30, %32 : vector<4x1xf32>
    %c0_21 = arith.constant 0 : index
    %c0_22 = arith.constant 0 : index
    %c2_23 = arith.constant 2 : index
    %34 = vector.load %arg4[%c0_21, %c0_22, %c2_23] : memref<1x4x3xf32, #tpu.memory_space<vmem>>, vector<1x4x1xf32>
    %35 = vector.shape_cast %34 : vector<1x4x1xf32> to vector<4x1xf32>
    %36 = vector.shape_cast %33 : vector<4x1xf32> to vector<1x4x1xf32>
    tpu.vector_store %arg4[%c0_21, %c0_22, %c2_23], %36 {strides = array<i32>} : memref<1x4x3xf32, #tpu.memory_space<vmem>>, vector<1x4x1xf32>,
    return
  }
  func.func @transform_0(%arg0: i32, %arg1: i32) -> (i32, i32, i32) {
    %c0_i32 = arith.constant 0 : i32
    %c0_i32_0 = arith.constant 0 : i32
    return %arg0, %c0_i32, %arg1 : i32, i32, i32
  }
  func.func @transform_1(%arg0: i32, %arg1: i32) -> (i32, i32, i32) {
    %c0_i32 = arith.constant 0 : i32
    %c0_i32_0 = arith.constant 0 : i32
    return %arg0, %c0_i32, %arg1 : i32, i32, i32
  }
  func.func @transform_2(%arg0: i32, %arg1: i32) -> (i32, i32, i32) {
    %c0_i32 = arith.constant 0 : i32
    %c0_i32_0 = arith.constant 0 : i32
    %c0_i32_1 = arith.constant 0 : i32
    return %arg0, %c0_i32, %c0_i32_0 : i32, i32, i32
  }
}

</mosaic_0001>

<llo_original>
// kernel: tpu_custom_call.1
$region0: #{tpu_custom_call.1}
  #allocation0 [shape = 'u32[]', space=smem, size = 0x4, offset = 0x4, fixed_abs, tag = 'smem constant byte address 0x4 - core index']
  #allocation1 [shape = 'u32[72,128]{1,0:T(1,128)}', space=vmem, size = 0x9000, scoped, tag = 'internal scratch']
  %s0 = inlined_call_operand.hbm [shape: f32[2,4,256], index: 0, kind: input, shape index: {}]
  %s1 = inlined_call_operand.hbm [shape: s32[2,1,256], index: 1, kind: input, shape index: {}]
  %s2 = inlined_call_operand.vmem [shape: f32[2,4,3], index: 2, kind: output, shape index: {}]
  %s3 = sld [smem:[#allocation0]]
  $region53: #{tpu_custom_call.1} parent=0
    _
  %s5 = ssub.s32 1, %s3
  %s6 = scalar_select 0, %s5, %s3
  $region1: #{tpu_custom_call.1} parent=0
    #allocation2 [shape = 'u8[8192]{0}', space=vmem, size = 0x2000, scoped, tag = 'input window, operand 0']
    #allocation3 [shape = 's32[2]{0}', space=sflag, size = 0x8, scoped, tag = 'scoped memory for tpu_custom_call.1']
    #allocation4 [shape = 'u8[2048]{0}', space=vmem, size = 0x800, scoped, tag = 'input window, operand 1']
    #allocation5 [shape = 's32[2]{0}', space=sflag, size = 0x8, scoped, tag = 'scoped memory for tpu_custom_call.1']
    %7 = vsyncpa [#allocation3], 0
    %s8 = scalar_lea.sflag [#allocation3], 1
    %9 = vsyncpa %s8, 0
    %10 = vsyncpa [#allocation5], 0
    %s11 = scalar_lea.sflag [#allocation5], 1
    %12 = vsyncpa %s11, 0
    loop: start=0, step=1, limit=4
    $region2: #{tpu_custom_call.1} parent=1 // loop_pre_header
      _
    $region3: #{tpu_custom_call.1} parent=1 // loop_header
      %s14 = sphi 0, %s18
      %p15 = scmp.ge.s32.totalorder %s14, 4
      %s21 = sphi 0, %s33
      %s22 = sphi 0, %s29
      %s23 = sphi 0, %s21
      %s24 = sphi 0, %s22
      %s25 = sphi 0, %s23
      %s26 = sphi 0, %s24
      %s38 = sphi 0, %s40
      %s41 = sphi 0, %s38
      %s42 = sphi 0, %s41
      %s58 = sphi 0, %s42
      %s66 = sphi 0, %s68
      %s69 = sphi 0, %s66
      %s70 = sphi 0, %s69
      %s86 = sphi 0, %s70
      %s92 = sphi 0, %s94
      %s95 = sphi 0, %s92
      %s96 = sphi 0, %s95
      %s112 = sphi 0, %s96
    $region4: #{tpu_custom_call.1} parent=1 // loop_header_branch
      %17 = sbr.rel (%p15) target = $region8
    $region5: #{tpu_custom_call.1} parent=1 // loop_body
      %s19 = ssub.s32 %s14, 1
      %s20 = ssub.s32 %s14, 2
      %s27 = sadd.s32 1, %s22
      %p28 = scmp.ge.s32.totalorder %s27, 1
      %s29 = scalar_select %p28, 0, %s27
      %s30 = sadd.s32 1, %s21
      %s31 = scalar_select %p28, %s30, %s21
      %p32 = scmp.ge.s32.totalorder %s31, 2
      %s33 = scalar_select %p32, 0, %s31
      %s34 = ssub.s32 %s21, %s33
      %s35 = ssub.s32 %s22, %s29
      %s36 = sor.u32 %s34, %s35
      %p37 = scmp.eq.s32.totalorder %s36, 0
      %s39 = sadd.s32 %s38, 1
      %s40 = scalar_select %p37, %s38, %s39
      %p43 = pneg %p37
      %p44 = scmp.eq.s32.totalorder %s14, 1
      %p45 = por %p43, %p44
      %p46 = scmp.ne.s32.totalorder %s38, %s41
      %p47 = scmp.eq.s32.totalorder %s14, 0
      %p48 = por %p46, %p47
      %p49 = scmp.ne.s32.totalorder %s38, %s41
      %p50 = scmp.eq.s32.totalorder %s19, 1
      %p51 = por %p49, %p50
      %p52 = scmp.ne.s32.totalorder %s41, %s42
      %p53 = scmp.eq.s32.totalorder %s19, 0
      %p54 = por %p52, %p53
      %p55 = scmp.ne.s32.totalorder %s41, %s42
      %p56 = scmp.eq.s32.totalorder %s20, 1
      %p57 = por %p55, %p56
      %p59 = scmp.ne.s32.totalorder %s42, %s58
      %p60 = scmp.eq.s32.totalorder %s20, 0
      %p61 = por %p59, %p60
      %s62 = ssub.s32 %s21, %s33
      %s63 = ssub.s32 %s22, %s29
      %s64 = sor.u32 %s62, %s63
      %p65 = scmp.eq.s32.totalorder %s64, 0
      %s67 = sadd.s32 %s66, 1
      %s68 = scalar_select %p65, %s66, %s67
      %p71 = pneg %p65
      %p72 = scmp.eq.s32.totalorder %s14, 1
      %p73 = por %p71, %p72
      %p74 = scmp.ne.s32.totalorder %s66, %s69
      %p75 = scmp.eq.s32.totalorder %s14, 0
      %p76 = por %p74, %p75
      %p77 = scmp.ne.s32.totalorder %s66, %s69
      %p78 = scmp.eq.s32.totalorder %s19, 1
      %p79 = por %p77, %p78
      %p80 = scmp.ne.s32.totalorder %s69, %s70
      %p81 = scmp.eq.s32.totalorder %s19, 0
      %p82 = por %p80, %p81
      %p83 = scmp.ne.s32.totalorder %s69, %s70
      %p84 = scmp.eq.s32.totalorder %s20, 1
      %p85 = por %p83, %p84
      %p87 = scmp.ne.s32.totalorder %s70, %s86
      %p88 = scmp.eq.s32.totalorder %s20, 0
      %p89 = por %p87, %p88
      %s90 = ssub.s32 %s21, %s33
      %p91 = scmp.eq.s32.totalorder %s90, 0
      %s93 = sadd.s32 %s92, 1
      %s94 = scalar_select %p91, %s92, %s93
      %p97 = pneg %p91
      %p98 = scmp.eq.s32.totalorder %s14, 1
      %p99 = por %p97, %p98
      %p100 = scmp.ne.s32.totalorder %s92, %s95
      %p101 = scmp.eq.s32.totalorder %s14, 0
      %p102 = por %p100, %p101
      %p103 = scmp.ne.s32.totalorder %s92, %s95
      %p104 = scmp.eq.s32.totalorder %s19, 1
      %p105 = por %p103, %p104
      %p106 = scmp.ne.s32.totalorder %s95, %s96
      %p107 = scmp.eq.s32.totalorder %s19, 0
      %p108 = por %p106, %p107
      %p109 = scmp.ne.s32.totalorder %s95, %s96
      %p110 = scmp.eq.s32.totalorder %s20, 1
      %p111 = por %p109, %p110
      %p113 = scmp.ne.s32.totalorder %s96, %s112
      %p114 = scmp.eq.s32.totalorder %s20, 0
      %p115 = por %p113, %p114
      %p116 = scmp.le.s32.totalorder 1, %s14
      %p117 = scmp.lt.s32.totalorder %s14, 3
      %p118 = pnand %p116, %p117
      %p119 = pneg %p118
      // Predicated region
      $region9: #{tpu_custom_call.1} parent=5 // pred_check
        _
      $region10: #{tpu_custom_call.1} parent=5 // pred_check_branch
        %121 = sbr.rel (%p118) target = $region12
      $region11: #{tpu_custom_call.1} parent=5 // pred_region
        %s122 = ssub.s32 %s14, 1
      $region12: #{tpu_custom_call.1} parent=5 // pred_fallthru
        _
      %p123 = scmp.lt.s32.totalorder %s14, 2
      // Predicated region
      $region13: #{tpu_custom_call.1} parent=5 // pred_check
        %p124 = pneg %p123
      $region14: #{tpu_custom_call.1} parent=5 // pred_check_branch
        %126 = sbr.rel (%p124) target = $region16
      $region15: #{tpu_custom_call.1} parent=5 // pred_region
        // Predicated region
        $region17: #{tpu_custom_call.1} parent=15 // pred_check
          %p127 = pneg %p48
        $region18: #{tpu_custom_call.1} parent=15 // pred_check_branch
          %129 = sbr.rel (%p127) target = $region20
        $region19: #{tpu_custom_call.1} parent=15 // pred_region
          %s130 = sand.u32 %s38, 1
          %s131 = scalar_lea.sflag [#allocation3], %s130
          %s132 = sand.u32 %s38, 1
          %s133 = smul.addr %s132, 8
          %s134 = scalar_lea.vmem [#allocation2], %s133
          %s135 = smul.u32 2, %s22
          %137 = vsyncadd %s131, 0
          %s138 = smul.addr %s21, 2
          %s139 = sadd.s32 %s135, %s138
          %s140 = smul.addr %s139, 4
          %s141 = scalar_lea.hbm %s0, %s140
          %s143 = sshll.u32 %s141, 4
          %s144 = int_to_ptr.hbm [resolvable:$true] %s143
          %s145 = sshll.u32 %s134, 4
          %s146 = int_to_ptr.vmem [resolvable:$true] %s145
          %148 = dma.hbm_to_vmem [thread:$0]  %s144, 128, %s146, %s131
        $region20: #{tpu_custom_call.1} parent=15 // pred_fallthru
          _
        // Predicated region
        $region21: #{tpu_custom_call.1} parent=15 // pred_check
          %p149 = pneg %p76
        $region22: #{tpu_custom_call.1} parent=15 // pred_check_branch
          %151 = sbr.rel (%p149) target = $region24
        $region23: #{tpu_custom_call.1} parent=15 // pred_region
          %s152 = sand.u32 %s66, 1
          %s153 = scalar_lea.sflag [#allocation5], %s152
          %s154 = sand.u32 %s66, 1
          %s155 = smul.addr %s154, 2
          %s156 = scalar_lea.vmem [#allocation4], %s155
          %s157 = smul.u32 2, %s22
          %159 = vsyncadd %s153, 0
          %s160 = smul.addr %s21, 2
          %s161 = sadd.s32 %s157, %s160
          %s162 = scalar_lea.hbm %s1, %s161
          %s164 = sshll.u32 %s162, 4
          %s165 = int_to_ptr.hbm [resolvable:$true] %s164
          %s166 = sshll.u32 %s156, 4
          %s167 = int_to_ptr.vmem [resolvable:$true] %s166
          %169 = dma.hbm_to_vmem [thread:$0]  %s165, 32, %s167, %s153
        $region24: #{tpu_custom_call.1} parent=15 // pred_fallthru
          _
      $region16: #{tpu_custom_call.1} parent=5 // pred_fallthru
        _
      %p170 = scmp.le.s32.totalorder 1, %s14
      %p171 = scmp.lt.s32.totalorder %s14, 3
      %p172 = pnand %p170, %p171
      %p173 = pneg %p172
      // Predicated region
      $region25: #{tpu_custom_call.1} parent=5 // pred_check
        _
      $region26: #{tpu_custom_call.1} parent=5 // pred_check_branch
        %175 = sbr.rel (%p172) target = $region28
      $region27: #{tpu_custom_call.1} parent=5 // pred_region
        %s176 = ssub.s32 %s14, 1
        %s177 = sand.u32 %s41, 1
        %s178 = scalar_lea.sflag [#allocation3], %s177
        %s179 = sand.u32 %s41, 1
        %s180 = smul.addr %s179, 8
        %s181 = scalar_lea.vmem [#allocation2], %s180
        // Predicated region
        $region29: #{tpu_custom_call.1} parent=27 // pred_check
          %p182 = pneg %p54
        $region30: #{tpu_custom_call.1} parent=27 // pred_check_branch
          %184 = sbr.rel (%p182) target = $region32
        $region31: #{tpu_custom_call.1} parent=27 // pred_region
          %186 = dma.done %s178, 128
        $region32: #{tpu_custom_call.1} parent=27 // pred_fallthru
          _
        %s187 = sand.u32 %s69, 1
        %s188 = scalar_lea.sflag [#allocation5], %s187
        %s189 = sand.u32 %s69, 1
        %s190 = smul.addr %s189, 2
        %s191 = scalar_lea.vmem [#allocation4], %s190
        // Predicated region
        $region33: #{tpu_custom_call.1} parent=27 // pred_check
          %p192 = pneg %p82
        $region34: #{tpu_custom_call.1} parent=27 // pred_check_branch
          %194 = sbr.rel (%p192) target = $region36
        $region35: #{tpu_custom_call.1} parent=27 // pred_region
          %196 = dma.done %s188, 32
        $region36: #{tpu_custom_call.1} parent=27 // pred_fallthru
          _
        %s197 = sand.u32 %s41, 1
        %s198 = scalar_lea.sflag [#allocation3], %s197
        %s199 = sand.u32 %s41, 1
        %s200 = smul.addr %s199, 8
        %s201 = scalar_lea.vmem [#allocation2], %s200
        %p202 = pneg %p54
        %p203 = pneg %p51
        %s204 = sand.u32 %s69, 1
        %s205 = scalar_lea.sflag [#allocation5], %s204
        %s206 = sand.u32 %s69, 1
        %s207 = smul.addr %s206, 2
        %s208 = scalar_lea.vmem [#allocation4], %s207
        %p209 = pneg %p82
        %p210 = pneg %p79
        %p211 = pneg %p108
        %p212 = pneg %p105
        %p213 = scmp.lt.s32.totalorder %s23, 1
        %s214 = scalar_select %p213, %s23, 1
        %s215 = smul.addr %s214, 4
        %s216 = scalar_lea.vmem %s2, %s215
        %s217 = smul.u32 2, %s24
        %s218 = smul.u32 2, %s24
        %p219 = scmp.lt.s32.totalorder %s23, 1
        %s220 = scalar_select %p219, %s23, 1
        %s221 = smul.addr %s220, 4
        %s222 = scalar_lea.vmem %s2, %s221
        %p223 = scmp.eq.s32.totalorder %s24, 0
        // Predicated region
        $region37: #{tpu_custom_call.1} parent=27 // pred_check
          %p224 = pneg %p223
        $region38: #{tpu_custom_call.1} parent=27 // pred_check_branch
          %226 = sbr.rel (%p224) target = $region40
        $region39: #{tpu_custom_call.1} parent=27 // pred_region
          %vm227 = vcmask 19456
          %228 = vst.msk [vmem:[%s222] sm:$0xf] %vm227, 0.0
        $region40: #{tpu_custom_call.1} parent=27 // pred_fallthru
          _
        %v229 = vld [vmem:[%s181] sm:$0xff]
        %v230 = vld [vmem:[%s191] sm:$0x3]
        %v231 = vlaneseq
        %v232 = vshrl.u32 %v231, 7
        %v233 = vperm.slane %v230, 0
        %v234 = vperm.slane %v230, 1
        %vm235 = vcmp.eq.s32.totalorder %v233, %v232
        %vm236 = vcmp.eq.s32.totalorder %v234, %v232
        %v237 = vsel %vm235, 1, 0
        %v238 = vsel %vm236, 1, 0
        %v239 = vcvt.s32.f32 %v237
        %v240 = vcvt.s32.f32 %v238
        %v241 = vld [vmem:[%s222] sm:$0xf]
        %v244 = vrot.slane %v240, 4
        %vm245 = vcmask 1043456
        %v246 = vsel %vm245, %v239, %v244
        %v248 = vmul.f32 %v229, %v246
        %250 = vst [vmem:[#allocation1] ss:$2 sm:$0xff] %v248
        %v251 = vld.sshfl [vmem:[#allocation1] sm:$0xff pattern:$0x75316420]
        %v252 = vld.sshfl [vmem:[#allocation1 + $0x8] sm:$0xff pattern:$0x75316420]
        %v255 = vsel %vm245, %v251, 0.0
        %v256 = vsel %vm245, %v252, 0.0
        %v257 = vadd.f32 %v255, %v256
        %258 = vadd.xlane.f32.xlu0 %v257
        %v259 = vpop.xlane.xlu0 %258
        %v260 = vadd.f32 %v241, %v259
        %vm261 = vcmask 3072
        %262 = vst.msk [vmem:[%s222] sm:$0xf] %vm261, %v260
        %v263 = vld [vmem:[%s222] sm:$0xf]
        %265 = vst [vmem:[#allocation1] ss:$2 sm:$0xff] %v229
        %v266 = vld.sshfl [vmem:[#allocation1] sm:$0xff pattern:$0x75316420]
        %v267 = vld.sshfl [vmem:[#allocation1 + $0x8] sm:$0xff pattern:$0x75316420]
        %v270 = vsel %vm245, %v266, 0.0
        %v271 = vsel %vm245, %v267, 0.0
        %v272 = vadd.f32 %v270, %v271
        %273 = vadd.xlane.f32.xlu0 %v272
        %v274 = vpop.xlane.xlu0 %273
        %v275 = vadd.f32 %v263, %v274
        %vm276 = vcmask 11272
        %277 = vst.msk [vmem:[%s222] sm:$0xf] %vm276, %v275
        %v278 = vld [vmem:[%s222] sm:$0xf]
        %v279 = vsel %vm245, %v239, 0.0
        %v280 = vsel %vm245, %v240, 0.0
        %v281 = vadd.f32 %v279, %v280
        %282 = vadd.xlane.f32.xlu0 %v281
        %v283 = vpop.xlane.xlu0 %282
        %v284 = vadd.f32 %v278, %v283
        %vm285 = vcmask 19472
        %286 = vst.msk [vmem:[%s222] sm:$0xf] %vm285, %v284
        %p287 = scmp.lt.s32.totalorder %s23, 1
        %s288 = scalar_select %p287, %s23, 1
        %s289 = smul.addr %s288, 4
        %s290 = scalar_lea.vmem %s2, %s289
        // Predicated region
        $region41: #{tpu_custom_call.1} parent=27 // pred_check
          %p291 = pneg %p105
        $region42: #{tpu_custom_call.1} parent=27 // pred_check_branch
          %293 = sbr.rel (%p291) target = $region44
        $region43: #{tpu_custom_call.1} parent=27 // pred_region
          _
        $region44: #{tpu_custom_call.1} parent=27 // pred_fallthru
          _
      $region28: #{tpu_custom_call.1} parent=5 // pred_fallthru
        _
      %p294 = scmp.le.s32.totalorder 2, %s14
      // Predicated region
      $region45: #{tpu_custom_call.1} parent=5 // pred_check
        %p295 = pneg %p294
      $region46: #{tpu_custom_call.1} parent=5 // pred_check_branch
        %297 = sbr.rel (%p295) target = $region48
      $region47: #{tpu_custom_call.1} parent=5 // pred_region
        %s298 = ssub.s32 %s14, 2
        // Predicated region
        $region49: #{tpu_custom_call.1} parent=47 // pred_check
          %p299 = pneg %p111
        $region50: #{tpu_custom_call.1} parent=47 // pred_check_branch
          %301 = sbr.rel (%p299) target = $region52
        $region51: #{tpu_custom_call.1} parent=47 // pred_region
          %p302 = scmp.lt.s32.totalorder %s25, 1
          %s303 = scalar_select %p302, %s25, 1
          %s304 = smul.addr %s303, 4
          %s305 = scalar_lea.vmem %s2, %s304
        $region52: #{tpu_custom_call.1} parent=47 // pred_fallthru
          _
      $region48: #{tpu_custom_call.1} parent=5 // pred_fallthru
        _
    $region6: #{tpu_custom_call.1} parent=1 // loop_footer
      %s18 = sadd.s32 1, %s14
    $region7: #{tpu_custom_call.1} parent=1 // loop_footer_branch
      %13 = sbr.rel target = $region3
    $region8: #{tpu_custom_call.1} parent=1 // loop_exit
      _
    %306 = vsyncpa [#allocation3], 1
    %s307 = scalar_lea.sflag [#allocation3], 1
    %308 = vsyncpa %s307, 1
    %309 = vsyncpa [#allocation5], 1
    %s310 = scalar_lea.sflag [#allocation5], 1
    %311 = vsyncpa %s310, 1

</llo_original>
